<compile_context>
chip_gen: v7x
topology: tpu7x:2x2x1
jax: 0.10.0
libtpu: 0.0.40
codegen_flags: <defaults>
</compile_context>

<pallas_src>
import functools

import jax
import jax.numpy as jnp
from jax.experimental import pallas as pl
from jax.experimental.pallas import tpu as pltpu

EPS = 1e-6


def _pad(x, m):
    return ((x + m - 1) // m) * m


def _tpu_budgets():
    """(double-buffered input-tile budget, vmem_limit_bytes) per TPU generation."""
    kind = ""
    try:
        kind = (jax.devices()[0].device_kind or "").lower()
    except Exception:  # defensive: interpret / unusual backends
        pass
    if "v7" in kind:                                   # 64 MiB physical VMEM per TC
        return 40 << 20, 56 << 20
    if "v6" in kind:                                   # 128 MiB physical, 32 MiB scoped default
        return 40 << 20, 100 << 20
    if "v5" in kind and ("lite" in kind or "v5e" in kind):   # v5e: 128 MiB physical
        return 24 << 20, 64 << 20
    return 24 << 20, 48 << 20                          # unknown: stay conservative


def _choose_tiling(way, shot, d, itemsize, budget):
    """Pick (num_slices, tile_way, blocks_per_slice)."""
    sub = 8 * max(1, 4 // itemsize)     # dtype-aware sublane multiple (f32:8, bf16:16, i8:32)
    lane = 128

    def step_bytes(tw):
        tw_p = _pad(tw, sub)
        feat = tw_p * _pad(shot * d, lane) * itemsize      # (tile_way, shot*d), double-buffered
        prot = tw_p * _pad(d, lane) * itemsize             # (tile_way, d),      double-buffered
        work = 4 * _pad(tw, 8) * _pad(d, lane) * 4         # f32 temporaries of one shot slice
        return 2 * (feat + prot) + work

    # Legal sublane-dim tile sizes for the 2-D blocks: multiples of 8 that divide
    # `way`, or the full `way` (block dim == full array dim is always legal).
    legal = sorted({t for t in range(8, way, 8) if way % t == 0} | {way})
    fitting = [t for t in legal if step_bytes(t) <= budget]
    multi = [t for t in fitting if t < way]                # >= 2 row blocks -> pipelined DMA
    if multi:
        tile_way = max(multi)
    elif fitting:
        tile_way = max(fitting)
    else:
        # TODO(synk): a very large `way` with no multiple-of-8 divisor would need a
        # masked remainder tile; fall back to the smallest legal block instead.
        tile_way = legal[0]

    blocks = way // tile_way
    # The leading "parallel" slice axis only pays off when each slice still gets a
    # pipelined stream (>= 2 blocks per slice); otherwise keep a single slice.
    num_slices = 2 if (blocks >= 4 and blocks % 2 == 0) else 1
    return num_slices, tile_way, blocks // num_slices


def _pl_loss_kernel(f_ref, p_ref, o_ref, acc_ref, *, shot, d):
    # f_ref: (tile_way, shot*d)   p_ref: (tile_way, d)
    # o_ref: (1, 1, 1) partial sum for this slice   acc_ref: (tile_way, 1) f32 scratch
    i = pl.program_id(1)

    @pl.when(i == 0)
    def _init():
        acc_ref[...] = jnp.zeros_like(acc_ref)

    # ||f - p + eps|| == ||f - (p - eps)||: do the eps add once on the small
    # prototype tile instead of on every streamed feature element.
    p_adj = p_ref[...].astype(jnp.float32) - EPS           # (tile_way, d)

    total = None
    for s in range(shot):                                  # static, unrolled; shot is small
        f_s = f_ref[:, s * d:(s + 1) * d].astype(jnp.float32)   # (tile_way, d) lane slice
        diff = f_s - p_adj
        sq = jnp.sum(diff * diff, axis=-1, keepdims=True)  # (tile_way, 1)
        dist = jnp.sqrt(sq)
        total = dist if total is None else total + dist
    acc_ref[...] += total                                  # elementwise; no per-step scalar reduce

    @pl.when(i == pl.num_programs(1) - 1)
    def _finalize():
        o_ref[...] = jnp.sum(acc_ref[...]).reshape(1, 1, 1)


def pl_loss(features, prototypes, *, shot, hidden_dims):
    """features: (way*shot, hidden_dims); prototypes: (way, hidden_dims) -> scalar loss."""
    n, d = features.shape
    way, d_p = prototypes.shape
    assert d == hidden_dims and d_p == hidden_dims and n == way * shot

    # Free, contiguous reshape: row w = [f_{w,0}, ..., f_{w,shot-1}] along lanes.
    # This gives fully sublane-dense 2-D tiles and lets the kernel reuse the raw
    # (way, d) prototypes without a pre-repeated (way*shot, d) copy in HBM.
    f2 = features.reshape(way, shot * d)

    budget, vmem_limit = _tpu_budgets()
    num_slices, tile_way, blocks_per_slice = _choose_tiling(
        way, shot, d, features.dtype.itemsize, budget)

    cost = pl.CostEstimate(
        flops=3 * n * d,
        transcendentals=n,
        bytes_accessed=(features.size * features.dtype.itemsize
                        + prototypes.size * prototypes.dtype.itemsize
                        + num_slices * 4),
    )

    kernel = functools.partial(_pl_loss_kernel, shot=shot, d=d)

    partials = pl.pallas_call(
        kernel,
        out_shape=jax.ShapeDtypeStruct((num_slices, 1, 1), jnp.float32),
        grid_spec=pltpu.PrefetchScalarGridSpec(
            num_scalar_prefetch=0,
            grid=(num_slices, blocks_per_slice),
            in_specs=[
                pl.BlockSpec((tile_way, shot * d),
                             lambda s, i: (s * blocks_per_slice + i, 0)),
                pl.BlockSpec((tile_way, d),
                             lambda s, i: (s * blocks_per_slice + i, 0)),
            ],
            out_specs=pl.BlockSpec((1, 1, 1), lambda s, i: (s, 0, 0)),
            scratch_shapes=[pltpu.VMEM((tile_way, 1), jnp.float32)],
        ),
        compiler_params=pltpu.CompilerParams(
            dimension_semantics=("parallel", "arbitrary"),
            vmem_limit_bytes=vmem_limit),
        cost_estimate=cost,
    )(f2, prototypes)

    return jnp.sum(partials)


def _reference(features, prototypes, *, shot, hidden_dims):
    protos = jnp.repeat(prototypes, shot, axis=0)
    diff = features.astype(jnp.float32) - protos.astype(jnp.float32) + EPS
    return jnp.sum(jnp.sqrt(jnp.sum(diff * diff, axis=-1)))


if __name__ == "__main__":
    key = jax.random.PRNGKey(0)
    k_feat, k_proto, k2f, k2p = jax.random.split(key, 4)

    # Small shapes matching the module (args.shot=2, args.hidden_dims=32, way=4).
    way, shot, hidden_dims = 4, 2, 32
    features = jax.random.normal(k_feat, (way * shot, hidden_dims), dtype=jnp.float32)
    prototypes = jax.random.normal(k_proto, (way, hidden_dims), dtype=jnp.float32)
    loss = jax.block_until_ready(
        pl_loss(features, prototypes, shot=shot, hidden_dims=hidden_dims))
    ref = _reference(features, prototypes, shot=shot, hidden_dims=hidden_dims)
    assert jnp.allclose(loss, ref, rtol=1e-5, atol=1e-5), (loss, ref)

    # Moderately larger shapes: exercises the multi-block accumulate/finalize path.
    way2, shot2, hidden2 = 32, 4, 256
    features2 = jax.random.normal(k2f, (way2 * shot2, hidden2), dtype=jnp.float32)
    prototypes2 = jax.random.normal(k2p, (way2, hidden2), dtype=jnp.float32)
    loss2 = jax.block_until_ready(
        pl_loss(features2, prototypes2, shot=shot2, hidden_dims=hidden2))
    ref2 = _reference(features2, prototypes2, shot=shot2, hidden_dims=hidden2)
    assert jnp.allclose(loss2, ref2, rtol=1e-4, atol=1e-3), (loss2, ref2)

    print("KERNEL_OK")
</pallas_src>

<mosaic_0001>
module attributes {stable_mosaic.version = 11 : i64} {
  func.func @_pl_loss_kernel(%arg0: i32, %arg1: i32, %arg2: memref<4x64xf32, #tpu.memory_space<vmem>>, %arg3: memref<4x32xf32, #tpu.memory_space<vmem>>, %arg4: memref<1x1x1xf32, #tpu.memory_space<vmem>>, %arg5: memref<4x1xf32, #tpu.memory_space<vmem>>) attributes {dimension_semantics = [#tpu.dimension_semantics<parallel>, #tpu.dimension_semantics<arbitrary>], iteration_bounds = array<i64: 1, 1>, scalar_prefetch = 0 : i64, scratch_operands = 1 : i64, tpu.core_type = #tpu.core_type<tc>, window_params = [{transform_indices = @transform_0, window_bounds = array<i64: 4, 64>}, {transform_indices = @transform_1, window_bounds = array<i64: 4, 32>}, {transform_indices = @transform_2, window_bounds = array<i64: 1, 1, 1>}]} {
    %c0_i32 = arith.constant 0 : i32
    %0 = arith.cmpi eq, %arg1, %c0_i32 : i32
    %1 = arith.extui %0 : i1 to i32
    %c0_i32_0 = arith.constant 0 : i32
    %2 = arith.cmpi ne, %1, %c0_i32_0 : i32
    scf.if %2 {
      %cst_13 = arith.constant 0.000000e+00 : f32
      %25 = vector.broadcast %cst_13 : f32 to vector<4x1xf32>
      %c0_14 = arith.constant 0 : index
      %c0_15 = arith.constant 0 : index
      %26 = vector.load %arg5[%c0_14, %c0_15] : memref<4x1xf32, #tpu.memory_space<vmem>>, vector<4x1xf32>
      tpu.vector_store %arg5[%c0_14, %c0_15], %25 {strides = array<i32>} : memref<4x1xf32, #tpu.memory_space<vmem>>, vector<4x1xf32>,
    } else {
    }
    %c0 = arith.constant 0 : index
    %c0_1 = arith.constant 0 : index
    %3 = vector.load %arg3[%c0, %c0_1] : memref<4x32xf32, #tpu.memory_space<vmem>>, vector<4x32xf32>
    %cst = arith.constant 9.99999997E-7 : f32
    %4 = vector.broadcast %cst : f32 to vector<4x32xf32>
    %5 = arith.subf %3, %4 : vector<4x32xf32>
    %c0_2 = arith.constant 0 : index
    %c0_3 = arith.constant 0 : index
    %6 = vector.load %arg2[%c0_2, %c0_3] : memref<4x64xf32, #tpu.memory_space<vmem>>, vector<4x32xf32>
    %7 = arith.subf %6, %5 : vector<4x32xf32>
    %8 = arith.mulf %7, %7 : vector<4x32xf32>
    %cst_4 = arith.constant dense<0.000000e+00> : vector<4xf32>
    %9 = vector.multi_reduction <add>, %8, %cst_4 [1] : vector<4x32xf32> to vector<4xf32>
    %10 = vector.shape_cast %9 : vector<4xf32> to vector<4x1xf32>
    %11 = math.sqrt %10 : vector<4x1xf32>
    %c0_5 = arith.constant 0 : index
    %c32 = arith.constant 32 : index
    %12 = vector.load %arg2[%c0_5, %c32] : memref<4x64xf32, #tpu.memory_space<vmem>>, vector<4x32xf32>
    %13 = arith.subf %12, %5 : vector<4x32xf32>
    %14 = arith.mulf %13, %13 : vector<4x32xf32>
    %cst_6 = arith.constant dense<0.000000e+00> : vector<4xf32>
    %15 = vector.multi_reduction <add>, %14, %cst_6 [1] : vector<4x32xf32> to vector<4xf32>
    %16 = vector.shape_cast %15 : vector<4xf32> to vector<4x1xf32>
    %17 = math.sqrt %16 : vector<4x1xf32>
    %18 = arith.addf %11, %17 : vector<4x1xf32>
    %c0_7 = arith.constant 0 : index
    %c0_8 = arith.constant 0 : index
    %19 = vector.load %arg5[%c0_7, %c0_8] : memref<4x1xf32, #tpu.memory_space<vmem>>, vector<4x1xf32>
    %20 = arith.addf %19, %18 : vector<4x1xf32>
    %c0_9 = arith.constant 0 : index
    %c0_10 = arith.constant 0 : index
    %21 = vector.load %arg5[%c0_9, %c0_10] : memref<4x1xf32, #tpu.memory_space<vmem>>, vector<4x1xf32>
    tpu.vector_store %arg5[%c0_9, %c0_10], %20 {strides = array<i32>} : memref<4x1xf32, #tpu.memory_space<vmem>>, vector<4x1xf32>,
    %c0_i32_11 = arith.constant 0 : i32
    %22 = arith.cmpi eq, %arg1, %c0_i32_11 : i32
    %23 = arith.extui %22 : i1 to i32
    %c0_i32_12 = arith.constant 0 : i32
    %24 = arith.cmpi ne, %23, %c0_i32_12 : i32
    scf.if %24 {
      %c0_13 = arith.constant 0 : index
      %c0_14 = arith.constant 0 : index
      %25 = vector.load %arg5[%c0_13, %c0_14] : memref<4x1xf32, #tpu.memory_space<vmem>>, vector<4x1xf32>
      %26 = vector.shape_cast %25 : vector<4x1xf32> to vector<1x4x1xf32>
      %cst_15 = arith.constant dense<0.000000e+00> : vector<1xf32>
      %27 = vector.multi_reduction <add>, %26, %cst_15 [1, 2] : vector<1x4x1xf32> to vector<1xf32>
      %28 = vector.shape_cast %27 : vector<1xf32> to vector<1x1x1xf32>
      %29 = vector.extract %28[0, 0, 0] : f32 from vector<1x1x1xf32>
      %30 = vector.broadcast %29 : f32 to vector<1x1x1xf32>
      %c0_16 = arith.constant 0 : index
      %c0_17 = arith.constant 0 : index
      %c0_18 = arith.constant 0 : index
      %31 = vector.load %arg4[%c0_16, %c0_17, %c0_18] : memref<1x1x1xf32, #tpu.memory_space<vmem>>, vector<1x1x1xf32>
      tpu.vector_store %arg4[%c0_16, %c0_17, %c0_18], %30 {strides = array<i32>} : memref<1x1x1xf32, #tpu.memory_space<vmem>>, vector<1x1x1xf32>,
    } else {
    }
    return
  }
  func.func @transform_0(%arg0: i32, %arg1: i32) -> (i32, i32) {
    %c1_i32 = arith.constant 1 : i32
    %0 = arith.muli %arg0, %c1_i32 : i32
    %1 = arith.addi %0, %arg1 : i32
    %c0_i32 = arith.constant 0 : i32
    %c0_i32_0 = arith.constant 0 : i32
    return %1, %c0_i32 : i32, i32
  }
  func.func @transform_1(%arg0: i32, %arg1: i32) -> (i32, i32) {
    %c1_i32 = arith.constant 1 : i32
    %0 = arith.muli %arg0, %c1_i32 : i32
    %1 = arith.addi %0, %arg1 : i32
    %c0_i32 = arith.constant 0 : i32
    %c0_i32_0 = arith.constant 0 : i32
    return %1, %c0_i32 : i32, i32
  }
  func.func @transform_2(%arg0: i32, %arg1: i32) -> (i32, i32, i32) {
    %c0_i32 = arith.constant 0 : i32
    %c0_i32_0 = arith.constant 0 : i32
    %c0_i32_1 = arith.constant 0 : i32
    return %arg0, %c0_i32, %c0_i32_0 : i32, i32, i32
  }
}

</mosaic_0001>

<llo_original>
// kernel: tpu_custom_call.1
$region0: #{tpu_custom_call.1}
  #allocation0 [shape = 'u32[]', space=smem, size = 0x4, offset = 0x4, fixed_abs, tag = 'smem constant byte address 0x4 - core index']
  #allocation1 [shape = 'u32[144,128]{1,0:T(1,128)}', space=vmem, size = 0x12000, scoped, tag = 'internal scratch']
  #allocation2 [shape = 'f32[4,1]{1,0:T(4,128)}', space=vmem, size = 0x800, scoped, tag = 'scratch operand']
  %s0 = inlined_call_operand.hbm [shape: f32[4,64], index: 0, kind: input, shape index: {}]
  %s1 = inlined_call_operand.hbm [shape: f32[4,32], index: 1, kind: input, shape index: {}]
  %s2 = inlined_call_operand.hbm [shape: f32[1,1,1], index: 2, kind: output, shape index: {}]
  %s3 = sld [smem:[#allocation0]]
  $region34: #{tpu_custom_call.1} parent=0
    _
  %s5 = ssub.s32 1, %s3
  %s6 = scalar_select 0, %s5, %s3
  $region1: #{tpu_custom_call.1} parent=0
    #allocation3 [shape = 'u8[2048]{0}', space=vmem, size = 0x800, scoped, tag = 'input window, operand 0, single buffered']
    #allocation4 [shape = 's32[1]{0}', space=sflag, size = 0x4, scoped, tag = 'scoped memory for tpu_custom_call.1']
    #allocation5 [shape = 's32[1]{0}', space=sflag, size = 0x4, scoped, tag = 'scoped memory for tpu_custom_call.1']
    #allocation6 [shape = 'u8[2048]{0}', space=vmem, size = 0x800, scoped, tag = 'input window, operand 1, single buffered']
    #allocation7 [shape = 's32[1]{0}', space=sflag, size = 0x4, scoped, tag = 'scoped memory for tpu_custom_call.1']
    #allocation8 [shape = 'u8[512]{0}', space=vmem, size = 0x400, scoped, tag = 'output window, operand 0, single buffered']
    %7 = vsyncpa [#allocation4], 0
    %8 = vsyncpa [#allocation7], 0
    %9 = vsyncpa [#allocation5], 0
    // Predicated region
    $region2: #{tpu_custom_call.1} parent=1 // pred_check
      _
    $region3: #{tpu_custom_call.1} parent=1 // pred_check_branch
      %11 = sbr.rel (0) target = $region5
    $region4: #{tpu_custom_call.1} parent=1 // pred_region
      %s12 = sadd.s32 0, 0
      %s14 = ssub.s32 64, 64
      %15 = vsyncadd [#allocation4], %s14
      %s16 = smul.addr %s12, 64
      %s17 = scalar_lea.hbm %s0, %s16
      %s19 = sshll.u32 [#allocation3], 4
      %s20 = int_to_ptr.vmem [resolvable:$true] %s19
      %22 = dma.hbm_to_vmem [thread:$0]  %s17, 64, %s20, [#allocation4]
    $region5: #{tpu_custom_call.1} parent=1 // pred_fallthru
      _
    // Predicated region
    $region6: #{tpu_custom_call.1} parent=1 // pred_check
      _
    $region7: #{tpu_custom_call.1} parent=1 // pred_check_branch
      %24 = sbr.rel (0) target = $region9
    $region8: #{tpu_custom_call.1} parent=1 // pred_region
      %s25 = sadd.s32 0, 0
      %s27 = ssub.s32 64, 64
      %28 = vsyncadd [#allocation7], %s27
      %s29 = smul.addr %s25, 64
      %s30 = scalar_lea.hbm %s1, %s29
      %s32 = sshll.u32 [#allocation6], 4
      %s33 = int_to_ptr.vmem [resolvable:$true] %s32
      %35 = dma.hbm_to_vmem [thread:$0]  %s30, 64, %s33, [#allocation7]
    $region9: #{tpu_custom_call.1} parent=1 // pred_fallthru
      _
    // Predicated region
    $region10: #{tpu_custom_call.1} parent=1 // pred_check
      _
    $region11: #{tpu_custom_call.1} parent=1 // pred_check_branch
      %37 = sbr.rel (0) target = $region13
    $region12: #{tpu_custom_call.1} parent=1 // pred_region
      %38 = dma.done [#allocation4], 64
    $region13: #{tpu_custom_call.1} parent=1 // pred_fallthru
      _
    // Predicated region
    $region14: #{tpu_custom_call.1} parent=1 // pred_check
      _
    $region15: #{tpu_custom_call.1} parent=1 // pred_check_branch
      %40 = sbr.rel (0) target = $region17
    $region16: #{tpu_custom_call.1} parent=1 // pred_region
      %41 = dma.done [#allocation7], 64
    $region17: #{tpu_custom_call.1} parent=1 // pred_fallthru
      _
    %s42 = sadd.s32 0, 0
    %s43 = sadd.s32 0, 0
    %p44 = scmp.eq.s32.totalorder 0, 0
    // Predicated region
    $region18: #{tpu_custom_call.1} parent=1 // pred_check
      %p45 = pneg %p44
    $region19: #{tpu_custom_call.1} parent=1 // pred_check_branch
      %47 = sbr.rel (%p45) target = $region21
    $region20: #{tpu_custom_call.1} parent=1 // pred_region
      %vm48 = vcmask 3072
      %49 = vst.msk [vmem:[#allocation2] sm:$0xf] %vm48, 0.0
    $region21: #{tpu_custom_call.1} parent=1 // pred_fallthru
      _
    %v50 = vld [vmem:[#allocation6] sm:$0xf]
    %v51 = vsub.f32 %v50, 1e-06
    %v52 = vld [vmem:[#allocation3] sm:$0xf]
    %v53 = vsub.f32 %v52, %v51
    %v54 = vmul.f32 %v53, %v53
    %vm55 = vcmask 257024
    %v56 = vsel %vm55, %v54, 0.0
    %57 = vadd.xlane.f32.xlu0 %v56
    %v58 = vpop.xlane.xlu0 %57
    %v59 = vrsqrt.pop %v58
    %v60 = vmul.f32 %v58, %v59
    %vm61 = vcmp.eq.f32.partialorder %v58, inf
    %v62 = vsel %vm61, %v58, %v60
    %vm63 = vcmp.eq.f32.partialorder %v58, 0.0
    %v64 = vand.u32 %v58, 2147483648
    %v65 = vsel %vm63, %v64, %v62
    %67 = vrot.lane.b32.xlu0 %v51, 32
    %v68 = vpop.permute.xlu0 %67
    %v70 = vsub.f32 %v52, %v68
    %v71 = vmul.f32 %v70, %v70
    %73 = vrot.lane.b32.xlu0 %v71, 96
    %v74 = vpop.permute.xlu0 %73
    %v76 = vsel %vm55, %v74, 0.0
    %77 = vadd.xlane.f32.xlu0 %v76
    %v78 = vpop.xlane.xlu0 %77
    %v79 = vrsqrt.pop %v78
    %v80 = vmul.f32 %v78, %v79
    %vm81 = vcmp.eq.f32.partialorder %v78, inf
    %v82 = vsel %vm81, %v78, %v80
    %vm83 = vcmp.eq.f32.partialorder %v78, 0.0
    %v84 = vand.u32 %v78, 2147483648
    %v85 = vsel %vm83, %v84, %v82
    %v86 = vadd.f32 %v65, %v85
    %v87 = vld [vmem:[#allocation2] sm:$0xf]
    %v88 = vadd.f32 %v87, %v86
    %vm89 = vcmask 3072
    %90 = vst.msk [vmem:[#allocation2] sm:$0xf] %vm89, %v88
    // Predicated region
    $region22: #{tpu_custom_call.1} parent=1 // pred_check
      %p91 = pneg %p44
    $region23: #{tpu_custom_call.1} parent=1 // pred_check_branch
      %93 = sbr.rel (%p91) target = $region25
    $region24: #{tpu_custom_call.1} parent=1 // pred_region
      %v94 = vld [vmem:[#allocation2] sm:$0xf]
      %v95 = vsel %vm89, %v94, 0.0
      %96 = vadd.xlane.f32.xlu0 %v95
      %v97 = vpop.xlane.xlu0 %96
      %v98 = vrot.slane %v97, 4
      %v99 = vadd.f32 %v97, %v98
      %v100 = vrot.slane %v99, 2
      %v101 = vadd.f32 %v99, %v100
      %v102 = vrot.slane %v101, 1
      %v103 = vadd.f32 %v101, %v102
      %s104 = vtos %v103
      %v105 = vstv %s104
      %vm106 = vcmask 0
      %107 = vst.msk [vmem:[#allocation8] sm:$0x1] %vm106, %v105
    $region25: #{tpu_custom_call.1} parent=1 // pred_fallthru
      _
    // Predicated region
    $region26: #{tpu_custom_call.1} parent=1 // pred_check
      _
    $region27: #{tpu_custom_call.1} parent=1 // pred_check_branch
      %109 = sbr.rel (0) target = $region29
    $region28: #{tpu_custom_call.1} parent=1 // pred_region
      %s111 = ssub.s32 16, 16
      %112 = vsyncadd [#allocation5], %s111
      %s114 = sshll.u32 [#allocation8], 4
      %s115 = int_to_ptr.vmem [resolvable:$true] %s114
      %117 = dma.vmem_to_hbm [thread:$0]  %s115, 16, %s2, [#allocation5]
    $region29: #{tpu_custom_call.1} parent=1 // pred_fallthru
      _
    // Predicated region
    $region30: #{tpu_custom_call.1} parent=1 // pred_check
      _
    $region31: #{tpu_custom_call.1} parent=1 // pred_check_branch
      %119 = sbr.rel (0) target = $region33
    $region32: #{tpu_custom_call.1} parent=1 // pred_region
      %120 = dma.done [#allocation5], 16
    $region33: #{tpu_custom_call.1} parent=1 // pred_fallthru
      _
    %121 = vsyncpa [#allocation4], 1
    %122 = vsyncpa [#allocation7], 1
    %123 = vsyncpa [#allocation5], 1

</llo_original>
